<compile_context>
chip_gen: v7x
topology: tpu7x:2x2x1
jax: 0.10.0
libtpu: 0.0.40
codegen_flags: <defaults>
</compile_context>

<pallas_src>
import jax
import jax.numpy as jnp
from jax.experimental import pallas as pl
from jax.experimental.pallas import tpu as pltpu

NUM_LEVELS = 3
INPUT_DIM = 16
HIDDEN_DIM = 64
LANE = 128                 # lane-padded logits width inside the kernel
NEG = -1e30                # effectively -inf for padded / masked logit columns
DEFAULT_ROW_TILE = 2048    # rows per grid step (amortize ~0.35 us fixed cost)


def _round_up(x, m):
    return ((x + m - 1) // m) * m


# ---------------------------------------------------------------------------
# Kernels
# ---------------------------------------------------------------------------
def _mlp_body(x_ref, w1_ref, w2_ref, w3_ref, b12_ref, b3_ref):
    """Shared 3-layer MLP body: bf16 matmuls on the MXU, f32 bias/ReLU."""
    x = x_ref[...]                                                    # (T, D) bf16
    h = jnp.dot(x, w1_ref[...], preferred_element_type=jnp.float32)
    h = jnp.maximum(h + b12_ref[0:1, :], 0.0)
    h = jnp.dot(h.astype(jnp.bfloat16), w2_ref[...],
                preferred_element_type=jnp.float32)
    h = jnp.maximum(h + b12_ref[1:2, :], 0.0)
    return jnp.dot(h.astype(jnp.bfloat16), w3_ref[...],
                   preferred_element_type=jnp.float32) + b3_ref[...]  # (T, LANE) f32


def _logits_kernel(x_ref, w1_ref, w2_ref, w3_ref, b12_ref, b3_ref, out_ref):
    out_ref[...] = _mlp_body(x_ref, w1_ref, w2_ref, w3_ref,
                             b12_ref, b3_ref).astype(out_ref.dtype)


def _levels_kernel(x_ref, w1_ref, w2_ref, w3_ref, b12_ref, b3_ref, lvl_ref):
    logits = _mlp_body(x_ref, w1_ref, w2_ref, w3_ref, b12_ref, b3_ref)
    # First-index argmax (matches torch/jnp tie-breaking); lands on the XLU.
    m = jnp.max(logits, axis=-1, keepdims=True)
    ids = jax.lax.broadcasted_iota(jnp.int32, logits.shape, 1)
    cand = jnp.where(logits >= m, ids, jnp.int32(LANE))
    lvl_ref[...] = jnp.min(cand, axis=-1, keepdims=True).astype(jnp.int32)


# ---------------------------------------------------------------------------
# Pallas wrappers
# ---------------------------------------------------------------------------
def _run_mlp_pallas(kernel, x2, w1, w2, w3, b12, b3, *, out_cols, out_dtype,
                    row_tile):
    B, d = x2.shape
    hp = w1.shape[-1]

    # Large MXU/VPU-friendly row tile; no forced multi-step grid (v5e/v6e are
    # single-TC; v7x still gets a >=2-step "parallel" grid once B >= 2*tile).
    tile = min(_round_up(row_tile, 8), _round_up(max(B, 8), 8))
    Bp = _round_up(B, tile)

    xk = x2.astype(jnp.bfloat16)
    if Bp != B:
        xk = jnp.pad(xk, ((0, Bp - B), (0, 0)))

    def full_spec(shape):
        nd = len(shape)
        return pl.BlockSpec(shape, lambda i, _nd=nd: (0,) * _nd)

    nbytes = lambda a: a.size * a.dtype.itemsize
    cost = pl.CostEstimate(
        flops=2 * Bp * (d * hp + hp * hp + hp * LANE),
        transcendentals=0,
        bytes_accessed=(nbytes(xk) + nbytes(w1) + nbytes(w2) + nbytes(w3)
                        + nbytes(b12) + nbytes(b3)
                        + Bp * out_cols * jnp.dtype(out_dtype).itemsize),
    )

    out = pl.pallas_call(
        kernel,
        out_shape=jax.ShapeDtypeStruct((Bp, out_cols), out_dtype),
        grid_spec=pltpu.PrefetchScalarGridSpec(
            num_scalar_prefetch=0,
            grid=(Bp // tile,),
            in_specs=[
                pl.BlockSpec((tile, d), lambda i: (i, 0)),   # x rows
                full_spec((d, hp)),                          # W1 (hidden-padded)
                full_spec((hp, hp)),                         # W2
                full_spec((hp, LANE)),                       # W3 (lane-padded)
                full_spec((2, hp)),                          # b1|b2 packed
                full_spec((1, LANE)),                        # b3 (lane-padded)
            ],
            out_specs=pl.BlockSpec((tile, out_cols), lambda i: (i, 0)),
        ),
        compiler_params=pltpu.CompilerParams(
            dimension_semantics=("parallel",),
        ),
        cost_estimate=cost,
    )(xk, w1, w2, w3, b12, b3)
    return out[:B]


def fidelity_logits_pallas(x2, params, *, row_tile=DEFAULT_ROW_TILE):
    """x2: (B, input_dim) -> f32 logits (B, num_levels). Verification/debug path."""
    out = _run_mlp_pallas(_logits_kernel, x2, params["w1"], params["w2"],
                          params["w3p"], params["b12"], params["b3p"],
                          out_cols=LANE, out_dtype=jnp.float32,
                          row_tile=row_tile)
    return out[:, :params["num_levels"]]


def fidelity_levels_pallas(x2, params, budget=None, *, row_tile=DEFAULT_ROW_TILE):
    """x2: (B, input_dim) -> int32 levels (B,). Fused MLP + budget mask + argmax."""
    w3, b3 = params["w3p"], params["b3p"]
    if budget is not None:
        # Bake the budget mask into W3/b3: zero weights + NEG bias on
        # unaffordable columns -> masked logits are exactly NEG, so an
        # all-unaffordable row tie-breaks to level 0 (like argmax over -inf).
        mask = (params["costs_lane"] <= jnp.asarray(budget, jnp.float32))[None, :]
        w3 = jnp.where(mask, w3, jnp.zeros_like(w3))
        b3 = jnp.where(mask, b3, jnp.asarray(NEG, jnp.float32))
    out = _run_mlp_pallas(_levels_kernel, x2, params["w1"], params["w2"], w3,
                          params["b12"], b3,
                          out_cols=1, out_dtype=jnp.int32, row_tile=row_tile)
    return out[:, 0]


# ---------------------------------------------------------------------------
# Module-level forward equivalents
# ---------------------------------------------------------------------------
def fidelity_select(x, params, accuracy_requirement=0.9, budget=None, *,
                    row_tile=DEFAULT_ROW_TILE, min_pallas_rows=256):
    """Adaptive branch of FidelitySelector.forward. Returns a Python int for a
    single input vector (matching .item()), or an int array for batched input."""
    single = (x.ndim == 1)
    x2 = x.reshape(-1, x.shape[-1])
    B = x2.shape[0]
    if B < min_pallas_rows:
        # Tiny batches: a ~13K-MAC/row MLP is launch-overhead bound in Pallas;
        # let XLA fuse it instead.
        logits = _reference_logits(x2, params)
        if budget is not None:
            cost_mask = params["costs"] <= jnp.asarray(budget, jnp.float32)
            logits = jnp.where(cost_mask[None, :], logits, -jnp.inf)
        levels = jnp.argmax(logits, axis=-1).astype(jnp.int32)
    else:
        levels = fidelity_levels_pallas(x2, params, budget=budget,
                                        row_tile=row_tile)
    if single:
        return int(levels[0])
    return levels.reshape(x.shape[:-1])


def fidelity_select_nonadaptive(params, accuracy_requirement=0.9, budget=None):
    """Non-adaptive branch (selector is None): host-side scalar logic.
    Comparisons done in float32, matching PyTorch tensor-vs-python-float."""
    acc = params["acc"]
    costs = params["costs"]
    n = params["num_levels"]
    req = float(jnp.asarray(accuracy_requirement, jnp.float32))
    valid = [i for i in range(n) if float(acc[i]) >= req]
    if valid:
        if budget is not None:
            bud = float(jnp.asarray(budget, jnp.float32))
            affordable = [i for i in valid if float(costs[i]) <= bud]
            return affordable[0] if affordable else 0
        return valid[0]
    return n - 1


# ---------------------------------------------------------------------------
# Parameters & plain-JAX reference
# ---------------------------------------------------------------------------
def init_params(key, input_dim=INPUT_DIM, hidden_dim=HIDDEN_DIM,
                num_levels=NUM_LEVELS):
    """Deterministic synthetic parameters (shapes mirror the PyTorch module).
    Kernel copies: bf16 weights, hidden dim zero-padded to 128 lanes, output
    projection zero/NEG-padded to 128 lanes."""
    ks = jax.random.split(key, 3)

    def lin(k, fan_in, fan_out):
        bound = 1.0 / jnp.sqrt(fan_in)
        kw, kb = jax.random.split(k)
        w = jax.random.uniform(kw, (fan_in, fan_out), jnp.float32, -bound, bound)
        b = jax.random.uniform(kb, (1, fan_out), jnp.float32, -bound, bound)
        return w, b

    w1, b1 = lin(ks[0], input_dim, hidden_dim)
    w2, b2 = lin(ks[1], hidden_dim, hidden_dim)
    w3, b3 = lin(ks[2], hidden_dim, num_levels)

    hp = _round_up(hidden_dim, 128)   # full-lane hidden width for the kernel
    w1p = jnp.zeros((input_dim, hp), jnp.float32).at[:, :hidden_dim].set(w1)
    w2p = jnp.zeros((hp, hp), jnp.float32).at[:hidden_dim, :hidden_dim].set(w2)
    w3p = jnp.zeros((hp, LANE), jnp.float32).at[:hidden_dim, :num_levels].set(w3)
    b12 = (jnp.zeros((2, hp), jnp.float32)
           .at[0, :hidden_dim].set(b1[0])
           .at[1, :hidden_dim].set(b2[0]))
    b3p = jnp.full((1, LANE), NEG, jnp.float32).at[0, :num_levels].set(b3[0])

    costs = jnp.asarray([1.0, 10.0, 100.0], jnp.float32)[:num_levels]
    costs_lane = jnp.full((LANE,), jnp.inf, jnp.float32).at[:num_levels].set(costs)

    return dict(
        # kernel operands
        w1=w1p.astype(jnp.bfloat16),
        w2=w2p.astype(jnp.bfloat16),
        w3p=w3p.astype(jnp.bfloat16),
        b12=b12, b3p=b3p,
        # metadata
        num_levels=num_levels,
        costs=costs, costs_lane=costs_lane,
        acc=jnp.asarray([0.7, 0.9, 0.99], jnp.float32)[:num_levels],
        # unpadded f32 copies for the plain-JAX reference / tiny-batch path
        w1_f32=w1, b1=b1, w2_f32=w2, b2=b2, w3_f32=w3, b3=b3,
    )


def _reference_logits(x2, p):
    """Plain-JAX f32 reference of the selector MLP forward pass."""
    h = jnp.maximum(x2 @ p["w1_f32"] + p["b1"], 0.0)
    h = jnp.maximum(h @ p["w2_f32"] + p["b2"], 0.0)
    return h @ p["w3_f32"] + p["b3"]


# ---------------------------------------------------------------------------
if __name__ == "__main__":
    key = jax.random.PRNGKey(0)
    kp, kx = jax.random.split(key)

    params = init_params(kp, INPUT_DIM, HIDDEN_DIM, NUM_LEVELS)

    batch, seq = 2, 8
    x = jax.random.normal(kx, (batch, seq, INPUT_DIM), jnp.float32)
    x2 = x.reshape(-1, INPUT_DIM)

    # 1) Pallas logits kernel vs plain-JAX f32 reference (bf16-matmul tolerance).
    logits = jax.block_until_ready(fidelity_logits_pallas(x2, params))
    ref = _reference_logits(x2, params)
    assert logits.shape == (batch * seq, NUM_LEVELS)
    assert jnp.allclose(logits, ref, atol=2e-2, rtol=2e-2), "mismatch vs reference"

    # 2) Fused argmax kernel matches argmax of the kernel's own logits
    #    (identical in-kernel numerics, so this is exact).
    levels_fused = jax.block_until_ready(fidelity_levels_pallas(x2, params))
    assert levels_fused.shape == (batch * seq,)
    assert jnp.array_equal(levels_fused, jnp.argmax(logits, axis=-1))

    # 3) fidelity_select forced onto the fused Pallas path.
    lv = fidelity_select(x, params, min_pallas_rows=0)
    assert lv.shape == (batch, seq)
    assert jnp.array_equal(lv.reshape(-1), levels_fused)

    # 4) Tiny-batch plain-JAX fallback matches the f32 reference argmax exactly.
    lv_small = fidelity_select(x, params)   # B=16 < 256 -> fallback path
    assert jnp.array_equal(lv_small.reshape(-1), jnp.argmax(ref, axis=-1))

    # 5) Budget masking (Pallas path): only level 0 (cost 1.0) affordable at 5.0.
    lv_budget = fidelity_select(x, params, budget=5.0, min_pallas_rows=0)
    assert bool(jnp.all(lv_budget == 0))
    # All levels unaffordable -> level 0 (matches torch argmax over all -inf).
    lv_broke = fidelity_select(x, params, budget=0.5, min_pallas_rows=0)
    assert bool(jnp.all(lv_broke == 0))

    # 6) Single-vector call returns a Python int (matches .item()).
    assert isinstance(fidelity_select(x[0, 0], params), int)

    # 7) Non-adaptive branch (float32 comparison semantics, as in PyTorch).
    assert fidelity_select_nonadaptive(params, accuracy_requirement=0.9,
                                       budget=50.0) == 1
    assert fidelity_select_nonadaptive(params,
                                       accuracy_requirement=0.999) == NUM_LEVELS - 1

    print("KERNEL_OK")
</pallas_src>

<mosaic_0001>
module attributes {stable_mosaic.version = 11 : i64} {
  func.func @_logits_kernel(%arg0: i32, %arg1: memref<16x16xbf16, #tpu.memory_space<vmem>>, %arg2: memref<16x128xbf16, #tpu.memory_space<vmem>>, %arg3: memref<128x128xbf16, #tpu.memory_space<vmem>>, %arg4: memref<128x128xbf16, #tpu.memory_space<vmem>>, %arg5: memref<2x128xf32, #tpu.memory_space<vmem>>, %arg6: memref<1x128xf32, #tpu.memory_space<vmem>>, %arg7: memref<16x128xf32, #tpu.memory_space<vmem>>) attributes {dimension_semantics = [#tpu.dimension_semantics<parallel>], iteration_bounds = array<i64: 1>, scalar_prefetch = 0 : i64, scratch_operands = 0 : i64, tpu.core_type = #tpu.core_type<tc>, window_params = [{transform_indices = @transform_0, window_bounds = array<i64: 16, 16>}, {pipeline_mode = #tpu.pipeline_mode<synchronous>, transform_indices = @transform_1, window_bounds = array<i64: 16, 128>}, {pipeline_mode = #tpu.pipeline_mode<synchronous>, transform_indices = @transform_2, window_bounds = array<i64: 128, 128>}, {pipeline_mode = #tpu.pipeline_mode<synchronous>, transform_indices = @transform_3, window_bounds = array<i64: 128, 128>}, {pipeline_mode = #tpu.pipeline_mode<synchronous>, transform_indices = @transform_4, window_bounds = array<i64: 2, 128>}, {pipeline_mode = #tpu.pipeline_mode<synchronous>, transform_indices = @transform_5, window_bounds = array<i64: 1, 128>}, {transform_indices = @transform_6, window_bounds = array<i64: 16, 128>}]} {
    %c0 = arith.constant 0 : index
    %c0_0 = arith.constant 0 : index
    %0 = vector.load %arg1[%c0, %c0_0] : memref<16x16xbf16, #tpu.memory_space<vmem>>, vector<16x16xbf16>
    %c0_1 = arith.constant 0 : index
    %c0_2 = arith.constant 0 : index
    %1 = vector.load %arg2[%c0_1, %c0_2] : memref<16x128xbf16, #tpu.memory_space<vmem>>, vector<16x128xbf16>
    %cst = arith.constant dense<0.000000e+00> : vector<16x128xf32>
    %2 = tpu.matmul %0, %1, %cst {dimension_numbers = #tpu.dot_dimension_numbers<[1], [0], [0], [1], [0, 0, 1, 1], [], []>} : vector<16x16xbf16>, vector<16x128xbf16>, vector<16x128xf32> -> vector<16x128xf32>
    %c0_3 = arith.constant 0 : index
    %c0_4 = arith.constant 0 : index
    %3 = vector.load %arg5[%c0_3, %c0_4] : memref<2x128xf32, #tpu.memory_space<vmem>>, vector<1x128xf32>
    %4 = vector.broadcast %3 : vector<1x128xf32> to vector<16x128xf32>
    %5 = arith.addf %2, %4 : vector<16x128xf32>
    %cst_5 = arith.constant 0.000000e+00 : f32
    %6 = vector.broadcast %cst_5 : f32 to vector<16x128xf32>
    %7 = arith.maximumf %5, %6 : vector<16x128xf32>
    %8 = arith.truncf %7 : vector<16x128xf32> to vector<16x128xbf16>
    %c0_6 = arith.constant 0 : index
    %c0_7 = arith.constant 0 : index
    %9 = vector.load %arg3[%c0_6, %c0_7] : memref<128x128xbf16, #tpu.memory_space<vmem>>, vector<128x128xbf16>
    %cst_8 = arith.constant dense<0.000000e+00> : vector<16x128xf32>
    %10 = tpu.matmul %8, %9, %cst_8 {dimension_numbers = #tpu.dot_dimension_numbers<[1], [0], [0], [1], [0, 0, 1, 1], [], []>} : vector<16x128xbf16>, vector<128x128xbf16>, vector<16x128xf32> -> vector<16x128xf32>
    %c1 = arith.constant 1 : index
    %c0_9 = arith.constant 0 : index
    %11 = vector.load %arg5[%c1, %c0_9] : memref<2x128xf32, #tpu.memory_space<vmem>>, vector<1x128xf32>
    %12 = vector.broadcast %11 : vector<1x128xf32> to vector<16x128xf32>
    %13 = arith.addf %10, %12 : vector<16x128xf32>
    %cst_10 = arith.constant 0.000000e+00 : f32
    %14 = vector.broadcast %cst_10 : f32 to vector<16x128xf32>
    %15 = arith.maximumf %13, %14 : vector<16x128xf32>
    %16 = arith.truncf %15 : vector<16x128xf32> to vector<16x128xbf16>
    %c0_11 = arith.constant 0 : index
    %c0_12 = arith.constant 0 : index
    %17 = vector.load %arg4[%c0_11, %c0_12] : memref<128x128xbf16, #tpu.memory_space<vmem>>, vector<128x128xbf16>
    %cst_13 = arith.constant dense<0.000000e+00> : vector<16x128xf32>
    %18 = tpu.matmul %16, %17, %cst_13 {dimension_numbers = #tpu.dot_dimension_numbers<[1], [0], [0], [1], [0, 0, 1, 1], [], []>} : vector<16x128xbf16>, vector<128x128xbf16>, vector<16x128xf32> -> vector<16x128xf32>
    %c0_14 = arith.constant 0 : index
    %c0_15 = arith.constant 0 : index
    %19 = vector.load %arg6[%c0_14, %c0_15] : memref<1x128xf32, #tpu.memory_space<vmem>>, vector<1x128xf32>
    %20 = vector.broadcast %19 : vector<1x128xf32> to vector<16x128xf32>
    %21 = arith.addf %18, %20 : vector<16x128xf32>
    %c0_16 = arith.constant 0 : index
    %c0_17 = arith.constant 0 : index
    %22 = vector.load %arg7[%c0_16, %c0_17] : memref<16x128xf32, #tpu.memory_space<vmem>>, vector<16x128xf32>
    tpu.vector_store %arg7[%c0_16, %c0_17], %21 {strides = array<i32>} : memref<16x128xf32, #tpu.memory_space<vmem>>, vector<16x128xf32>,
    return
  }
  func.func @transform_0(%arg0: i32) -> (i32, i32) {
    %c0_i32 = arith.constant 0 : i32
    %c0_i32_0 = arith.constant 0 : i32
    return %arg0, %c0_i32 : i32, i32
  }
  func.func @transform_1(%arg0: i32) -> (i32, i32) {
    %c0_i32 = arith.constant 0 : i32
    %c0_i32_0 = arith.constant 0 : i32
    %c0_i32_1 = arith.constant 0 : i32
    return %c0_i32, %c0_i32_0 : i32, i32
  }
  func.func @transform_2(%arg0: i32) -> (i32, i32) {
    %c0_i32 = arith.constant 0 : i32
    %c0_i32_0 = arith.constant 0 : i32
    %c0_i32_1 = arith.constant 0 : i32
    return %c0_i32, %c0_i32_0 : i32, i32
  }
  func.func @transform_3(%arg0: i32) -> (i32, i32) {
    %c0_i32 = arith.constant 0 : i32
    %c0_i32_0 = arith.constant 0 : i32
    %c0_i32_1 = arith.constant 0 : i32
    return %c0_i32, %c0_i32_0 : i32, i32
  }
  func.func @transform_4(%arg0: i32) -> (i32, i32) {
    %c0_i32 = arith.constant 0 : i32
    %c0_i32_0 = arith.constant 0 : i32
    %c0_i32_1 = arith.constant 0 : i32
    return %c0_i32, %c0_i32_0 : i32, i32
  }
  func.func @transform_5(%arg0: i32) -> (i32, i32) {
    %c0_i32 = arith.constant 0 : i32
    %c0_i32_0 = arith.constant 0 : i32
    %c0_i32_1 = arith.constant 0 : i32
    return %c0_i32, %c0_i32_0 : i32, i32
  }
  func.func @transform_6(%arg0: i32) -> (i32, i32) {
    %c0_i32 = arith.constant 0 : i32
    %c0_i32_0 = arith.constant 0 : i32
    return %arg0, %c0_i32 : i32, i32
  }
}

</mosaic_0001>

<llo_original>
// kernel: tpu_custom_call.1
$region0: #{tpu_custom_call.1}
  #allocation0 [shape = 'u32[]', space=smem, size = 0x4, offset = 0x4, fixed_abs, tag = 'smem constant byte address 0x4 - core index']
  #allocation1 [shape = 'u32[144,128]{1,0:T(1,128)}', space=vmem, size = 0x12000, scoped, tag = 'internal scratch']
  %s0 = inlined_call_operand.hbm [shape: bf16[16,16], index: 0, kind: input, shape index: {}]
  %s1 = inlined_call_operand.hbm [shape: bf16[16,128], index: 1, kind: input, shape index: {}]
  %s2 = inlined_call_operand.hbm [shape: bf16[128,128], index: 2, kind: input, shape index: {}]
  %s3 = inlined_call_operand.hbm [shape: bf16[128,128], index: 3, kind: input, shape index: {}]
  %s4 = inlined_call_operand.vmem [shape: f32[2,128], index: 4, kind: input, shape index: {}]
  %s5 = inlined_call_operand.vmem [shape: f32[1,128], index: 5, kind: input, shape index: {}]
  %s6 = inlined_call_operand.hbm [shape: f32[16,128], index: 6, kind: output, shape index: {}]
  %s7 = sld [smem:[#allocation0]]
  $region50: #{tpu_custom_call.1} parent=0
    _
  %s9 = ssub.s32 1, %s7
  %s10 = scalar_select 0, %s9, %s7
  $region1: #{tpu_custom_call.1} parent=0
    #allocation2 [shape = 'u8[4096]{0}', space=vmem, size = 0x1000, scoped, tag = 'input window, operand 0, single buffered']
    #allocation3 [shape = 's32[1]{0}', space=sflag, size = 0x4, scoped, tag = 'scoped memory for tpu_custom_call.1']
    #allocation4 [shape = 's32[1]{0}', space=sflag, size = 0x4, scoped, tag = 'scoped memory for tpu_custom_call.1']
    #allocation5 [shape = 'u8[4096]{0}', space=vmem, size = 0x1000, scoped, tag = 'input window, operand 1, single buffered']
    #allocation6 [shape = 's32[1]{0}', space=sflag, size = 0x4, scoped, tag = 'scoped memory for tpu_custom_call.1']
    #allocation7 [shape = 'u8[32768]{0}', space=vmem, size = 0x8000, scoped, tag = 'input window, operand 2, single buffered']
    #allocation8 [shape = 'u8[32768]{0}', space=vmem, size = 0x8000, scoped, tag = 'input window, operand 3, single buffered']
    #allocation9 [shape = 's32[1]{0}', space=sflag, size = 0x4, scoped, tag = 'scoped memory for tpu_custom_call.1']
    #allocation10 [shape = 'u8[8192]{0}', space=vmem, size = 0x2000, scoped, tag = 'output window, operand 0, single buffered']
    %11 = vsyncpa [#allocation3], 0
    %12 = vsyncpa [#allocation6], 0
    %13 = vsyncpa [#allocation9], 0
    %14 = vsyncpa [#allocation4], 0
    // Predicated region
    $region2: #{tpu_custom_call.1} parent=1 // pred_check
      _
    $region3: #{tpu_custom_call.1} parent=1 // pred_check_branch
      %16 = sbr.rel (0) target = $region5
    $region4: #{tpu_custom_call.1} parent=1 // pred_region
      %s18 = ssub.s32 128, 128
      %19 = vsyncadd [#allocation3], %s18
      %s20 = sshll.u32 [#allocation2], 4
      %s21 = int_to_ptr.vmem [resolvable:$true] %s20
      %26 = dma.hbm_to_vmem [thread:$0]  %s0, 128, %s21, [#allocation3], 64, 64, 4
    $region5: #{tpu_custom_call.1} parent=1 // pred_fallthru
      _
    // Predicated region
    $region6: #{tpu_custom_call.1} parent=1 // pred_check
      _
    $region7: #{tpu_custom_call.1} parent=1 // pred_check_branch
      %28 = sbr.rel (0) target = $region9
    $region8: #{tpu_custom_call.1} parent=1 // pred_region
      %s30 = ssub.s32 128, 128
      %31 = vsyncadd [#allocation6], %s30
      %s32 = sshll.u32 [#allocation5], 4
      %s33 = int_to_ptr.vmem [resolvable:$true] %s32
      %38 = dma.hbm_to_vmem [thread:$0]  %s1, 128, %s33, [#allocation6], 64, 64, 4
    $region9: #{tpu_custom_call.1} parent=1 // pred_fallthru
      _
    // Predicated region
    $region10: #{tpu_custom_call.1} parent=1 // pred_check
      _
    $region11: #{tpu_custom_call.1} parent=1 // pred_check_branch
      %40 = sbr.rel (0) target = $region13
    $region12: #{tpu_custom_call.1} parent=1 // pred_region
      %s42 = ssub.s32 1024, 1024
      %43 = vsyncadd [#allocation6], %s42
      %s44 = sshll.u32 [#allocation7], 4
      %s45 = int_to_ptr.vmem [resolvable:$true] %s44
      %50 = dma.hbm_to_vmem [thread:$0]  %s2, 1024, %s45, [#allocation6], 64, 64, 4
    $region13: #{tpu_custom_call.1} parent=1 // pred_fallthru
      _
    // Predicated region
    $region14: #{tpu_custom_call.1} parent=1 // pred_check
      _
    $region15: #{tpu_custom_call.1} parent=1 // pred_check_branch
      %52 = sbr.rel (0) target = $region17
    $region16: #{tpu_custom_call.1} parent=1 // pred_region
      %s54 = ssub.s32 1024, 1024
      %55 = vsyncadd [#allocation9], %s54
      %s56 = sshll.u32 [#allocation8], 4
      %s57 = int_to_ptr.vmem [resolvable:$true] %s56
      %62 = dma.hbm_to_vmem [thread:$0]  %s3, 1024, %s57, [#allocation9], 64, 64, 4
    $region17: #{tpu_custom_call.1} parent=1 // pred_fallthru
      _
    // Predicated region
    $region18: #{tpu_custom_call.1} parent=1 // pred_check
      _
    $region19: #{tpu_custom_call.1} parent=1 // pred_check_branch
      %64 = sbr.rel (0) target = $region21
    $region20: #{tpu_custom_call.1} parent=1 // pred_region
      _
    $region21: #{tpu_custom_call.1} parent=1 // pred_fallthru
      _
    // Predicated region
    $region22: #{tpu_custom_call.1} parent=1 // pred_check
      _
    $region23: #{tpu_custom_call.1} parent=1 // pred_check_branch
      %66 = sbr.rel (0) target = $region25
    $region24: #{tpu_custom_call.1} parent=1 // pred_region
      _
    $region25: #{tpu_custom_call.1} parent=1 // pred_fallthru
      _
    // Predicated region
    $region26: #{tpu_custom_call.1} parent=1 // pred_check
      _
    $region27: #{tpu_custom_call.1} parent=1 // pred_check_branch
      %68 = sbr.rel (0) target = $region29
    $region28: #{tpu_custom_call.1} parent=1 // pred_region
      %69 = dma.done [#allocation3], 128
    $region29: #{tpu_custom_call.1} parent=1 // pred_fallthru
      _
    // Predicated region
    $region30: #{tpu_custom_call.1} parent=1 // pred_check
      _
    $region31: #{tpu_custom_call.1} parent=1 // pred_check_branch
      %71 = sbr.rel (0) target = $region33
    $region32: #{tpu_custom_call.1} parent=1 // pred_region
      %72 = dma.done [#allocation6], 128
    $region33: #{tpu_custom_call.1} parent=1 // pred_fallthru
      _
    // Predicated region
    $region34: #{tpu_custom_call.1} parent=1 // pred_check
      _
    $region35: #{tpu_custom_call.1} parent=1 // pred_check_branch
      %74 = sbr.rel (0) target = $region37
    $region36: #{tpu_custom_call.1} parent=1 // pred_region
      %75 = dma.done [#allocation6], 1024
    $region37: #{tpu_custom_call.1} parent=1 // pred_fallthru
      _
    // Predicated region
    $region38: #{tpu_custom_call.1} parent=1 // pred_check
      _
    $region39: #{tpu_custom_call.1} parent=1 // pred_check_branch
      %77 = sbr.rel (0) target = $region41
    $region40: #{tpu_custom_call.1} parent=1 // pred_region
      %78 = dma.done [#allocation9], 1024
    $region41: #{tpu_custom_call.1} parent=1 // pred_fallthru
      _
    %v80 = vld [vmem:[#allocation2] sm:$0xf]
    %v81 = vld [vmem:[#allocation2 + $0x4] sm:$0xf]
    %v82 = vld [vmem:[#allocation5] sm:$0xf]
    %v83 = vld [vmem:[#allocation5 + $0x4] sm:$0xf]
    %v84 = vld [vmem:[%s4] sm:$0x1]
    %v85 = vlaneseq
    %v86 = vshrl.u32 %v85, 7
    %v87 = vsub.s32 0, %v86
    %v88 = vrot.slane %v84, %v87
    %v91 = vunpack.c.l.b16 %v80
    %v92 = vunpack.c.l.b16 %v81
    %v93 = vpack.c.b16 %v92, %v91
    %v96 = vunpack.c.l.b16 %v82
    %v97 = vunpack.c.l.b16 %v83
    %v98 = vpack.c.b16 %v97, %v96
    %vm100 = vcmask 130048
    %v102 = vsel %vm100, %v93, 0
    %104 = vmatprep.subr.bf16.mxu0 0
    %105 = vmatpush1.bf16.msra.mxu0 %v98
    %106 = vmatprep.subr.bf16.mxu0 0
    %107 = vmatpush1.bf16.msra.mxu0 0
    %108 = vmatprep.subr.bf16.mxu0 0
    %109 = vmatpush1.bf16.msra.mxu0 0
    %110 = vmatprep.subr.bf16.mxu0 0
    %111 = vmatpush1.bf16.msra.mxu0 0
    %112 = vmatprep.subr.bf16.mxu0 0
    %113 = vmatpush1.bf16.msra.mxu0 0
    %114 = vmatprep.subr.bf16.mxu0 0
    %115 = vmatpush1.bf16.msra.mxu0 0
    %116 = vmatprep.subr.bf16.mxu0 0
    %117 = vmatpush1.bf16.msra.mxu0 0
    %118 = vmatprep.subr.bf16.mxu0 0
    %119 = vmatpush1.bf16.msra.mxu0 0
    %120 = vmatprep.subr.bf16.mxu0 0
    %121 = vmatpush1.bf16.msra.mxu0 0
    %122 = vmatprep.subr.bf16.mxu0 0
    %123 = vmatpush1.bf16.msra.mxu0 0
    %124 = vmatprep.subr.bf16.mxu0 0
    %125 = vmatpush1.bf16.msra.mxu0 0
    %126 = vmatprep.subr.bf16.mxu0 0
    %127 = vmatpush1.bf16.msra.mxu0 0
    %128 = vmatprep.subr.bf16.mxu0 0
    %129 = vmatpush1.bf16.msra.mxu0 0
    %130 = vmatprep.subr.bf16.mxu0 0
    %131 = vmatpush1.bf16.msra.mxu0 0
    %132 = vmatprep.subr.bf16.mxu0 0
    %133 = vmatpush1.bf16.msra.mxu0 0
    %134 = vmatprep.subr.bf16.mxu0 0
    %135 = vmatpush1.bf16.msra.mxu0 0
    %136 = vmatprep.mubr.bf16.mxu0 0
    %137 = vmatmul.mubr.bf16.gmra.mrb[0].mxu0 %v102
    %v138 = vpop.f32.mrb[0].mxu0
    %v139 = vadd.f32 %v88, %v138
    %v140 = vpop.f32.mrb[0].mxu0
    %v141 = vpop.f32.mrb[0].mxu0
    %v142 = vadd.f32 %v88, %v141
    %v143 = vpop.f32.mrb[0].mxu0
    %144 = vdwg.mxu0
    %v145 = vmax.f32 %v139, 0.0
    %v146 = vmax.f32 %v142, 0.0
    %v147 = vpack.c.bf16 %v146, %v145
    %v148 = vld [vmem:[#allocation7] sm:$0xf]
    %v149 = vld [vmem:[#allocation7 + $0x4] sm:$0xf]
    %v150 = vld [vmem:[#allocation7 + $0x8] sm:$0xf]
    %v151 = vld [vmem:[#allocation7 + $0xc] sm:$0xf]
    %v152 = vld [vmem:[#allocation7 + $0x10] sm:$0xf]
    %v153 = vld [vmem:[#allocation7 + $0x14] sm:$0xf]
    %v154 = vld [vmem:[#allocation7 + $0x18] sm:$0xf]
    %v155 = vld [vmem:[#allocation7 + $0x1c] sm:$0xf]
    %v156 = vld [vmem:[#allocation7 + $0x20] sm:$0xf]
    %v157 = vld [vmem:[#allocation7 + $0x24] sm:$0xf]
    %v158 = vld [vmem:[#allocation7 + $0x28] sm:$0xf]
    %v159 = vld [vmem:[#allocation7 + $0x2c] sm:$0xf]
    %v160 = vld [vmem:[#allocation7 + $0x30] sm:$0xf]
    %v161 = vld [vmem:[#allocation7 + $0x34] sm:$0xf]
    %v162 = vld [vmem:[#allocation7 + $0x38] sm:$0xf]
    %v163 = vld [vmem:[#allocation7 + $0x3c] sm:$0xf]
    %v164 = vld [vmem:[%s4 + $0x1] sm:$0x1]
    %v165 = vlaneseq
    %v166 = vshrl.u32 %v165, 7
    %v167 = vsub.s32 0, %v166
    %v168 = vrot.slane %v164, %v167
    %v185 = vunpack.c.l.b16 %v148
    %v186 = vunpack.c.l.b16 %v149
    %v187 = vunpack.c.l.b16 %v150
    %v188 = vunpack.c.l.b16 %v151
    %v189 = vunpack.c.l.b16 %v152
    %v190 = vunpack.c.l.b16 %v153
    %v191 = vunpack.c.l.b16 %v154
    %v192 = vunpack.c.l.b16 %v155
    %v193 = vunpack.c.l.b16 %v156
    %v194 = vunpack.c.l.b16 %v157
    %v195 = vunpack.c.l.b16 %v158
    %v196 = vunpack.c.l.b16 %v159
    %v197 = vunpack.c.l.b16 %v160
    %v198 = vunpack.c.l.b16 %v161
    %v199 = vunpack.c.l.b16 %v162
    %v200 = vunpack.c.l.b16 %v163
    %v201 = vpack.c.b16 %v186, %v185
    %v202 = vpack.c.b16 %v188, %v187
    %v203 = vpack.c.b16 %v190, %v189
    %v204 = vpack.c.b16 %v192, %v191
    %v205 = vpack.c.b16 %v194, %v193
    %v206 = vpack.c.b16 %v196, %v195
    %v207 = vpack.c.b16 %v198, %v197
    %v208 = vpack.c.b16 %v200, %v199
    %217 = vmatprep.subr.bf16.mxu0 0
    %218 = vmatpush1.bf16.msra.mxu0 %v201
    %219 = vmatprep.subr.bf16.mxu0 0
    %220 = vmatpush1.bf16.msra.mxu0 %v202
    %221 = vmatprep.subr.bf16.mxu0 0
    %222 = vmatpush1.bf16.msra.mxu0 %v203
    %223 = vmatprep.subr.bf16.mxu0 0
    %224 = vmatpush1.bf16.msra.mxu0 %v204
    %225 = vmatprep.subr.bf16.mxu0 0
    %226 = vmatpush1.bf16.msra.mxu0 %v205
    %227 = vmatprep.subr.bf16.mxu0 0
    %228 = vmatpush1.bf16.msra.mxu0 %v206
    %229 = vmatprep.subr.bf16.mxu0 0
    %230 = vmatpush1.bf16.msra.mxu0 %v207
    %231 = vmatprep.subr.bf16.mxu0 0
    %232 = vmatpush1.bf16.msra.mxu0 %v208
    %233 = vmatprep.subr.bf16.mxu0 0
    %234 = vmatpush1.bf16.msra.mxu0 0
    %235 = vmatprep.subr.bf16.mxu0 0
    %236 = vmatpush1.bf16.msra.mxu0 0
    %237 = vmatprep.subr.bf16.mxu0 0
    %238 = vmatpush1.bf16.msra.mxu0 0
    %239 = vmatprep.subr.bf16.mxu0 0
    %240 = vmatpush1.bf16.msra.mxu0 0
    %241 = vmatprep.subr.bf16.mxu0 0
    %242 = vmatpush1.bf16.msra.mxu0 0
    %243 = vmatprep.subr.bf16.mxu0 0
    %244 = vmatpush1.bf16.msra.mxu0 0
    %245 = vmatprep.subr.bf16.mxu0 0
    %246 = vmatpush1.bf16.msra.mxu0 0
    %247 = vmatprep.subr.bf16.mxu0 0
    %248 = vmatpush1.bf16.msra.mxu0 0
    %249 = vmatprep.mubr.bf16.mxu0 0
    %250 = vmatmul.mubr.bf16.gmra.mrb[0].mxu0 %v147
    %v251 = vpop.f32.mrb[0].mxu0
    %v252 = vadd.f32 %v168, %v251
    %v253 = vpop.f32.mrb[0].mxu0
    %v254 = vpop.f32.mrb[0].mxu0
    %v255 = vadd.f32 %v168, %v254
    %v256 = vpop.f32.mrb[0].mxu0
    %257 = vdwg.mxu0
    %v258 = vmax.f32 %v252, 0.0
    %v259 = vmax.f32 %v255, 0.0
    %v260 = vpack.c.bf16 %v259, %v258
    %v261 = vld [vmem:[#allocation8] sm:$0xf]
    %v262 = vld [vmem:[#allocation8 + $0x4] sm:$0xf]
    %v263 = vld [vmem:[#allocation8 + $0x8] sm:$0xf]
    %v264 = vld [vmem:[#allocation8 + $0xc] sm:$0xf]
    %v265 = vld [vmem:[#allocation8 + $0x10] sm:$0xf]
    %v266 = vld [vmem:[#allocation8 + $0x14] sm:$0xf]
    %v267 = vld [vmem:[#allocation8 + $0x18] sm:$0xf]
    %v268 = vld [vmem:[#allocation8 + $0x1c] sm:$0xf]
    %v269 = vld [vmem:[#allocation8 + $0x20] sm:$0xf]
    %v270 = vld [vmem:[#allocation8 + $0x24] sm:$0xf]
    %v271 = vld [vmem:[#allocation8 + $0x28] sm:$0xf]
    %v272 = vld [vmem:[#allocation8 + $0x2c] sm:$0xf]
    %v273 = vld [vmem:[#allocation8 + $0x30] sm:$0xf]
    %v274 = vld [vmem:[#allocation8 + $0x34] sm:$0xf]
    %v275 = vld [vmem:[#allocation8 + $0x38] sm:$0xf]
    %v276 = vld [vmem:[#allocation8 + $0x3c] sm:$0xf]
    %v277 = vld [vmem:[%s5] sm:$0x1]
    %v279 = vlaneseq
    %v280 = vshrl.u32 %v279, 7
    %v281 = vsub.s32 0, %v280
    %v282 = vrot.slane %v277, %v281
    %v300 = vunpack.c.l.b16 %v261
    %v301 = vunpack.c.l.b16 %v262
    %v302 = vunpack.c.l.b16 %v263
    %v303 = vunpack.c.l.b16 %v264
    %v304 = vunpack.c.l.b16 %v265
    %v305 = vunpack.c.l.b16 %v266
    %v306 = vunpack.c.l.b16 %v267
    %v307 = vunpack.c.l.b16 %v268
    %v308 = vunpack.c.l.b16 %v269
    %v309 = vunpack.c.l.b16 %v270
    %v310 = vunpack.c.l.b16 %v271
    %v311 = vunpack.c.l.b16 %v272
    %v312 = vunpack.c.l.b16 %v273
    %v313 = vunpack.c.l.b16 %v274
    %v314 = vunpack.c.l.b16 %v275
    %v315 = vunpack.c.l.b16 %v276
    %v316 = vpack.c.b16 %v301, %v300
    %v317 = vpack.c.b16 %v303, %v302
    %v318 = vpack.c.b16 %v305, %v304
    %v319 = vpack.c.b16 %v307, %v306
    %v320 = vpack.c.b16 %v309, %v308
    %v321 = vpack.c.b16 %v311, %v310
    %v322 = vpack.c.b16 %v313, %v312
    %v323 = vpack.c.b16 %v315, %v314
    %332 = vmatprep.subr.bf16.mxu0 0
    %333 = vmatpush1.bf16.msra.mxu0 %v316
    %334 = vmatprep.subr.bf16.mxu0 0
    %335 = vmatpush1.bf16.msra.mxu0 %v317
    %336 = vmatprep.subr.bf16.mxu0 0
    %337 = vmatpush1.bf16.msra.mxu0 %v318
    %338 = vmatprep.subr.bf16.mxu0 0
    %339 = vmatpush1.bf16.msra.mxu0 %v319
    %340 = vmatprep.subr.bf16.mxu0 0
    %341 = vmatpush1.bf16.msra.mxu0 %v320
    %342 = vmatprep.subr.bf16.mxu0 0
    %343 = vmatpush1.bf16.msra.mxu0 %v321
    %344 = vmatprep.subr.bf16.mxu0 0
    %345 = vmatpush1.bf16.msra.mxu0 %v322
    %346 = vmatprep.subr.bf16.mxu0 0
    %347 = vmatpush1.bf16.msra.mxu0 %v323
    %348 = vmatprep.subr.bf16.mxu0 0
    %349 = vmatpush1.bf16.msra.mxu0 0
    %350 = vmatprep.subr.bf16.mxu0 0
    %351 = vmatpush1.bf16.msra.mxu0 0
    %352 = vmatprep.subr.bf16.mxu0 0
    %353 = vmatpush1.bf16.msra.mxu0 0
    %354 = vmatprep.subr.bf16.mxu0 0
    %355 = vmatpush1.bf16.msra.mxu0 0
    %356 = vmatprep.subr.bf16.mxu0 0
    %357 = vmatpush1.bf16.msra.mxu0 0
    %358 = vmatprep.subr.bf16.mxu0 0
    %359 = vmatpush1.bf16.msra.mxu0 0
    %360 = vmatprep.subr.bf16.mxu0 0
    %361 = vmatpush1.bf16.msra.mxu0 0
    %362 = vmatprep.subr.bf16.mxu0 0
    %363 = vmatpush1.bf16.msra.mxu0 0
    %364 = vmatprep.mubr.bf16.mxu0 0
    %365 = vmatmul.mubr.bf16.gmra.mrb[0].mxu0 %v260
    %v366 = vpop.f32.mrb[0].mxu0
    %v367 = vadd.f32 %v282, %v366
    %v368 = vpop.f32.mrb[0].mxu0
    %v369 = vpop.f32.mrb[0].mxu0
    %v370 = vadd.f32 %v282, %v369
    %v371 = vpop.f32.mrb[0].mxu0
    %372 = vdwg.mxu0
    %373 = vst [vmem:[#allocation10] sm:$0xff] %v367
    %374 = vst [vmem:[#allocation10 + $0x8] sm:$0xff] %v370
    // Predicated region
    $region42: #{tpu_custom_call.1} parent=1 // pred_check
      _
    $region43: #{tpu_custom_call.1} parent=1 // pred_check_branch
      %376 = sbr.rel (0) target = $region45
    $region44: #{tpu_custom_call.1} parent=1 // pred_region
      %s378 = ssub.s32 256, 256
      %379 = vsyncadd [#allocation4], %s378
      %s380 = sshll.u32 [#allocation10], 4
      %s381 = int_to_ptr.vmem [resolvable:$true] %s380
      %386 = dma.vmem_to_hbm [thread:$0]  %s381, 256, %s6, [#allocation4], 128, 128, 8
    $region45: #{tpu_custom_call.1} parent=1 // pred_fallthru
      _
    // Predicated region
    $region46: #{tpu_custom_call.1} parent=1 // pred_check
      _
    $region47: #{tpu_custom_call.1} parent=1 // pred_check_branch
      %388 = sbr.rel (0) target = $region49
    $region48: #{tpu_custom_call.1} parent=1 // pred_region
      %389 = dma.done [#allocation4], 256
    $region49: #{tpu_custom_call.1} parent=1 // pred_fallthru
      _
    %390 = vsyncpa [#allocation3], 1
    %391 = vsyncpa [#allocation6], 1
    %392 = vsyncpa [#allocation9], 1
    %393 = vsyncpa [#allocation4], 1

</llo_original>
